<compile_context>
chip_gen: v6e
topology: v6e:2x2x1
jax: 0.10.0
libtpu: 0.0.40
codegen_flags: <defaults>
</compile_context>

<pallas_src>
import jax
import jax.numpy as jnp
from jax.experimental import pallas as pl
from jax.experimental.pallas import tpu as pltpu

# Synthetic "config" (small, deterministic)
ENTITY_DIM = 32
RELATION_DIM = 32
IN_DIM = ENTITY_DIM + RELATION_DIM   # 64
OUT_DIM = ENTITY_DIM                 # 32

SUBLANE = 8          # TPU sublane width (second-to-last dim granularity)
MAX_TILE_B = 4096    # rows per grid step; big tiles amortize per-step overhead


def _round_up(n, m):
    return (n + m - 1) // m * m


def _linear_relu_kernel(x_ref, w_ref, b_ref, o_ref):
    # Hot path: matmul on the MXU (f32 accumulate), bias add + ReLU on the VPU.
    y = jnp.dot(x_ref[...], w_ref[...], preferred_element_type=jnp.float32)
    y = y + b_ref[...]                       # broadcast (1, OUT_DIM) over rows
    o_ref[...] = jnp.maximum(y, 0.0).astype(o_ref.dtype)


def action_encoder_forward(x, w, b, *, max_tile_b=MAX_TILE_B):
    """x: [B, IN_DIM], w: [IN_DIM, OUT_DIM], b: [1, OUT_DIM] -> [B, OUT_DIM]."""
    B, in_dim = x.shape
    out_dim = w.shape[1]

    # Number of grid steps: enough that each tile is <= max_tile_b rows, and
    # at least 2 when there's enough work so both v7x TensorCores get a share
    # of the "parallel" batch axis.
    n_steps = max(1, pl.cdiv(B, max_tile_b))
    if n_steps == 1 and B > SUBLANE:
        n_steps = 2
    tb = _round_up(pl.cdiv(B, n_steps), SUBLANE)
    b_pad = n_steps * tb

    # Tail padding is tiny (< n_steps * 8 rows), never a full re-pad of x.
    x_p = x if b_pad == B else jnp.pad(x, ((0, b_pad - B), (0, 0)))

    out = pl.pallas_call(
        _linear_relu_kernel,
        out_shape=jax.ShapeDtypeStruct((b_pad, out_dim), x.dtype),
        grid=(n_steps,),
        in_specs=[
            # x tiles stream with the grid; weight/bias stay resident in VMEM.
            pl.BlockSpec((tb, in_dim), lambda i: (i, 0)),
            pl.BlockSpec((in_dim, out_dim), lambda i: (0, 0)),
            pl.BlockSpec((1, out_dim), lambda i: (0, 0)),
        ],
        # Last block dim == full array dim (OUT_DIM): legal and contiguous.
        out_specs=pl.BlockSpec((tb, out_dim), lambda i: (i, 0)),
        compiler_params=pltpu.CompilerParams(
            dimension_semantics=("parallel",),   # shard batch across TCs (v7x)
        ),
    )(x_p, w, b)

    # Drop only the (tiny) padded tail rows; output feature axis is unpadded.
    return out if b_pad == B else out[:B]


if __name__ == "__main__":
    key = jax.random.PRNGKey(0)
    kx, kw, kb, kx2 = jax.random.split(key, 4)

    # Deterministic parameter init (matches nn.Linear's uniform(-1/sqrt(in), 1/sqrt(in)) range)
    bound = 1.0 / jnp.sqrt(jnp.float32(IN_DIM))
    w = jax.random.uniform(kw, (IN_DIM, OUT_DIM), dtype=jnp.float32,
                           minval=-bound, maxval=bound)
    b = jax.random.uniform(kb, (1, OUT_DIM), dtype=jnp.float32,
                           minval=-bound, maxval=bound)

    # Small-shape check (B=8): single tile, no padding.
    B = 8
    x = jax.random.normal(kx, (B, IN_DIM), dtype=jnp.float32)
    out = jax.block_until_ready(action_encoder_forward(x, w, b))
    ref = jnp.maximum(x @ w + b, 0.0)
    assert out.shape == (B, OUT_DIM)
    assert jnp.allclose(out, ref, atol=1e-5, rtol=1e-5), "mismatch vs reference (B=8)"

    # Tiled / pipelined path check (B=1000 -> 2 grid steps of 504 rows, 8-row tail pad).
    B2 = 1000
    x2 = jax.random.normal(kx2, (B2, IN_DIM), dtype=jnp.float32)
    out2 = jax.block_until_ready(action_encoder_forward(x2, w, b))
    ref2 = jnp.maximum(x2 @ w + b, 0.0)
    assert out2.shape == (B2, OUT_DIM)
    assert jnp.allclose(out2, ref2, atol=1e-5, rtol=1e-5), "mismatch vs reference (B=1000)"

    print("KERNEL_OK")
</pallas_src>

<mosaic_0001>
module attributes {stable_mosaic.version = 11 : i64} {
  func.func @_linear_relu_kernel(%arg0: i32, %arg1: memref<8x64xf32, #tpu.memory_space<vmem>>, %arg2: memref<64x32xf32, #tpu.memory_space<vmem>>, %arg3: memref<1x32xf32, #tpu.memory_space<vmem>>, %arg4: memref<8x32xf32, #tpu.memory_space<vmem>>) attributes {dimension_semantics = [#tpu.dimension_semantics<parallel>], iteration_bounds = array<i64: 1>, scalar_prefetch = 0 : i64, scratch_operands = 0 : i64, tpu.core_type = #tpu.core_type<tc>, window_params = [{transform_indices = @transform_0, window_bounds = array<i64: 8, 64>}, {pipeline_mode = #tpu.pipeline_mode<synchronous>, transform_indices = @transform_1, window_bounds = array<i64: 64, 32>}, {pipeline_mode = #tpu.pipeline_mode<synchronous>, transform_indices = @transform_2, window_bounds = array<i64: 1, 32>}, {transform_indices = @transform_3, window_bounds = array<i64: 8, 32>}]} {
    %c0 = arith.constant 0 : index
    %c0_0 = arith.constant 0 : index
    %0 = vector.load %arg1[%c0, %c0_0] : memref<8x64xf32, #tpu.memory_space<vmem>>, vector<8x64xf32>
    %c0_1 = arith.constant 0 : index
    %c0_2 = arith.constant 0 : index
    %1 = vector.load %arg2[%c0_1, %c0_2] : memref<64x32xf32, #tpu.memory_space<vmem>>, vector<64x32xf32>
    %cst = arith.constant dense<0.000000e+00> : vector<8x32xf32>
    %2 = tpu.matmul %0, %1, %cst {dimension_numbers = #tpu.dot_dimension_numbers<[1], [0], [0], [1], [0, 0, 1, 1], [], []>} : vector<8x64xf32>, vector<64x32xf32>, vector<8x32xf32> -> vector<8x32xf32>
    %c0_3 = arith.constant 0 : index
    %c0_4 = arith.constant 0 : index
    %3 = vector.load %arg3[%c0_3, %c0_4] : memref<1x32xf32, #tpu.memory_space<vmem>>, vector<1x32xf32>
    %4 = vector.broadcast %3 : vector<1x32xf32> to vector<8x32xf32>
    %5 = arith.addf %2, %4 : vector<8x32xf32>
    %cst_5 = arith.constant 0.000000e+00 : f32
    %6 = vector.broadcast %cst_5 : f32 to vector<8x32xf32>
    %7 = arith.maximumf %5, %6 : vector<8x32xf32>
    %c0_6 = arith.constant 0 : index
    %c0_7 = arith.constant 0 : index
    %8 = vector.load %arg4[%c0_6, %c0_7] : memref<8x32xf32, #tpu.memory_space<vmem>>, vector<8x32xf32>
    tpu.vector_store %arg4[%c0_6, %c0_7], %7 {strides = array<i32>} : memref<8x32xf32, #tpu.memory_space<vmem>>, vector<8x32xf32>,
    return
  }
  func.func @transform_0(%arg0: i32) -> (i32, i32) {
    %c0_i32 = arith.constant 0 : i32
    %c0_i32_0 = arith.constant 0 : i32
    return %arg0, %c0_i32 : i32, i32
  }
  func.func @transform_1(%arg0: i32) -> (i32, i32) {
    %c0_i32 = arith.constant 0 : i32
    %c0_i32_0 = arith.constant 0 : i32
    %c0_i32_1 = arith.constant 0 : i32
    return %c0_i32, %c0_i32_0 : i32, i32
  }
  func.func @transform_2(%arg0: i32) -> (i32, i32) {
    %c0_i32 = arith.constant 0 : i32
    %c0_i32_0 = arith.constant 0 : i32
    %c0_i32_1 = arith.constant 0 : i32
    return %c0_i32, %c0_i32_0 : i32, i32
  }
  func.func @transform_3(%arg0: i32) -> (i32, i32) {
    %c0_i32 = arith.constant 0 : i32
    %c0_i32_0 = arith.constant 0 : i32
    return %arg0, %c0_i32 : i32, i32
  }
}

</mosaic_0001>

<llo_original>
// kernel: tpu_custom_call.1
$region0: #{tpu_custom_call.1}
  #allocation0 [shape = 'u32[]', space=smem, size = 0x4, offset = 0x4, fixed_abs, tag = 'smem constant byte address 0x4 - core index']
  #allocation1 [shape = 'u32[144,128]{1,0:T(1,128)}', space=vmem, size = 0x12000, scoped, tag = 'internal scratch']
  %s0 = inlined_call_operand.vmem [shape: f32[8,64], index: 0, kind: input, shape index: {}]
  %s1 = inlined_call_operand.vmem [shape: f32[64,32], index: 1, kind: input, shape index: {}]
  %s2 = inlined_call_operand.vmem [shape: f32[1,32], index: 2, kind: input, shape index: {}]
  %s3 = inlined_call_operand.hbm [shape: f32[8,32], index: 3, kind: output, shape index: {}]
  %s4 = sld [smem:[#allocation0]]
  $region22: #{tpu_custom_call.1} parent=0
    _
  %s6 = ssub.s32 1, %s4
  %s7 = scalar_select 0, %s6, %s4
  $region1: #{tpu_custom_call.1} parent=0
    #allocation2 [shape = 'u8[4096]{0}', space=vmem, size = 0x1000, scoped, tag = 'output window, operand 0, single buffered']
    #allocation3 [shape = 's32[1]{0}', space=sflag, size = 0x4, scoped, tag = 'scoped memory for tpu_custom_call.1']
    %8 = vsyncpa [#allocation3], 0
    // Predicated region
    $region2: #{tpu_custom_call.1} parent=1 // pred_check
      _
    $region3: #{tpu_custom_call.1} parent=1 // pred_check_branch
      %10 = sbr.rel (0) target = $region5
    $region4: #{tpu_custom_call.1} parent=1 // pred_region
      _
    $region5: #{tpu_custom_call.1} parent=1 // pred_fallthru
      _
    // Predicated region
    $region6: #{tpu_custom_call.1} parent=1 // pred_check
      _
    $region7: #{tpu_custom_call.1} parent=1 // pred_check_branch
      %12 = sbr.rel (0) target = $region9
    $region8: #{tpu_custom_call.1} parent=1 // pred_region
      _
    $region9: #{tpu_custom_call.1} parent=1 // pred_fallthru
      _
    // Predicated region
    $region10: #{tpu_custom_call.1} parent=1 // pred_check
      _
    $region11: #{tpu_custom_call.1} parent=1 // pred_check_branch
      %14 = sbr.rel (0) target = $region13
    $region12: #{tpu_custom_call.1} parent=1 // pred_region
      _
    $region13: #{tpu_custom_call.1} parent=1 // pred_fallthru
      _
    %v15 = vld [vmem:[%s0] sm:$0xff]
    %v16 = vld [vmem:[%s1] sm:$0xff]
    %v17 = vld [vmem:[%s1 + $0x8] sm:$0xff]
    %v18 = vld [vmem:[%s1 + $0x10] sm:$0xff]
    %v19 = vld [vmem:[%s1 + $0x18] sm:$0xff]
    %v20 = vld [vmem:[%s1 + $0x20] sm:$0xff]
    %v21 = vld [vmem:[%s1 + $0x28] sm:$0xff]
    %v22 = vld [vmem:[%s1 + $0x30] sm:$0xff]
    %v23 = vld [vmem:[%s1 + $0x38] sm:$0xff]
    %v24 = vld [vmem:[%s2] sm:$0x1]
    %v26 = vlaneseq
    %v27 = vshrl.u32 %v26, 7
    %v28 = vsub.s32 0, %v27
    %v29 = vrot.slane %v24, %v28
    %vm31 = vcmask 523264
    %v33 = vsel %vm31, %v15, 0
    %35 = vmatprep.subr.mxu0 0.0
    %36 = vmatpush1.msra.mxu0 0.0
    %37 = vmatprep.subr.mxu0 0.0
    %38 = vmatpush1.msra.mxu0 0.0
    %39 = vmatprep.subr.mxu0 0.0
    %40 = vmatpush1.msra.mxu0 0.0
    %41 = vmatprep.subr.mxu0 0.0
    %42 = vmatpush1.msra.mxu0 0.0
    %43 = vmatprep.subr.mxu0 0.0
    %44 = vmatpush1.msra.mxu0 0.0
    %45 = vmatprep.subr.mxu0 0.0
    %46 = vmatpush1.msra.mxu0 0.0
    %47 = vmatprep.subr.mxu0 0.0
    %48 = vmatpush1.msra.mxu0 0.0
    %49 = vmatprep.subr.mxu0 0.0
    %50 = vmatpush1.msra.mxu0 0.0
    %51 = vmatprep.subr.mxu0 0.0
    %52 = vmatpush1.msra.mxu0 %v23
    %53 = vmatprep.subr.mxu0 0.0
    %54 = vmatpush1.msra.mxu0 %v22
    %55 = vmatprep.subr.mxu0 0.0
    %56 = vmatpush1.msra.mxu0 %v21
    %57 = vmatprep.subr.mxu0 0.0
    %58 = vmatpush1.msra.mxu0 %v20
    %59 = vmatprep.subr.mxu0 0.0
    %60 = vmatpush1.msra.mxu0 %v19
    %61 = vmatprep.subr.mxu0 0.0
    %62 = vmatpush1.msra.mxu0 %v18
    %63 = vmatprep.subr.mxu0 0.0
    %64 = vmatpush1.msra.mxu0 %v17
    %65 = vmatprep.subr.mxu0 0.0
    %66 = vmatpush1.msra.mxu0 %v16
    %67 = vmatprep.subr.mxu0 0.0
    %68 = vmatpush2.msra.mxu0 0.0
    %69 = vmatprep.subr.mxu0 0.0
    %70 = vmatpush2.msra.mxu0 0.0
    %71 = vmatprep.subr.mxu0 0.0
    %72 = vmatpush2.msra.mxu0 0.0
    %73 = vmatprep.subr.mxu0 0.0
    %74 = vmatpush2.msra.mxu0 0.0
    %75 = vmatprep.subr.mxu0 0.0
    %76 = vmatpush2.msra.mxu0 0.0
    %77 = vmatprep.subr.mxu0 0.0
    %78 = vmatpush2.msra.mxu0 0.0
    %79 = vmatprep.subr.mxu0 0.0
    %80 = vmatpush2.msra.mxu0 0.0
    %81 = vmatprep.subr.mxu0 0.0
    %82 = vmatpush2.msra.mxu0 0.0
    %83 = vmatprep.subr.mxu0 0.0
    %84 = vmatpush2.msra.mxu0 0.0
    %85 = vmatprep.subr.mxu0 0.0
    %86 = vmatpush2.msra.mxu0 0.0
    %87 = vmatprep.subr.mxu0 0.0
    %88 = vmatpush2.msra.mxu0 0.0
    %89 = vmatprep.subr.mxu0 0.0
    %90 = vmatpush2.msra.mxu0 0.0
    %91 = vmatprep.subr.mxu0 0.0
    %92 = vmatpush2.msra.mxu0 0.0
    %93 = vmatprep.subr.mxu0 0.0
    %94 = vmatpush2.msra.mxu0 0.0
    %95 = vmatprep.subr.mxu0 0.0
    %96 = vmatpush2.msra.mxu0 0.0
    %97 = vmatprep.subr.mxu0 0.0
    %98 = vmatpush2.msra.mxu0 0.0
    %99 = vmatprep.mubr.f32.mxu0 0.0
    %100 = vmatmul.mubr.f32.gmra.mxu0 %v33
    %v101 = vpop.f32.mrf.mxu0
    %v102 = vadd.f32 %v29, %v101
    %v103 = vpop.f32.mrf.mxu0
    %104 = vdwg.mxu0
    %v105 = vmax.f32 %v102, 0.0
    %vm106 = vcmask 261120
    %107 = vst.msk [vmem:[#allocation2] sm:$0xff] %vm106, %v105
    // Predicated region
    $region14: #{tpu_custom_call.1} parent=1 // pred_check
      _
    $region15: #{tpu_custom_call.1} parent=1 // pred_check_branch
      %109 = sbr.rel (0) target = $region17
    $region16: #{tpu_custom_call.1} parent=1 // pred_region
      %s111 = ssub.s32 128, 128
      %112 = vsyncadd [#allocation3], %s111
      %s114 = sshll.u32 [#allocation2], 4
      %s115 = int_to_ptr.vmem [resolvable:$true] %s114
      %117 = dma.vmem_to_hbm [thread:$0]  %s115, 128, %s3, [#allocation3]
    $region17: #{tpu_custom_call.1} parent=1 // pred_fallthru
      _
    // Predicated region
    $region18: #{tpu_custom_call.1} parent=1 // pred_check
      _
    $region19: #{tpu_custom_call.1} parent=1 // pred_check_branch
      %119 = sbr.rel (0) target = $region21
    $region20: #{tpu_custom_call.1} parent=1 // pred_region
      %120 = dma.done [#allocation3], 128
    $region21: #{tpu_custom_call.1} parent=1 // pred_fallthru
      _
    %121 = vsyncpa [#allocation3], 1

</llo_original>
